<compile_context>
chip_gen: v7x
topology: tpu7x:2x2x1
jax: 0.10.0
libtpu: 0.0.40
codegen_flags: <defaults>
</compile_context>

<pallas_src>
import math
import jax
import jax.numpy as jnp
from jax.experimental import pallas as pl
from jax.experimental.pallas import tpu as pltpu

_INV_SQRT2 = 0.7071067811865476


def _erf_f32(x):
    # torch.erf equivalent: Abramowitz & Stegun 7.1.26 polynomial, |err| <= 1.5e-7.
    # (Used instead of lax.erf, whose Mosaic lowering is not guaranteed.)
    p = 0.3275911
    a1, a2, a3, a4, a5 = (0.254829592, -0.284496736, 1.421413741,
                          -1.453152027, 1.061405429)
    ax = jnp.abs(x)
    t = 1.0 / (1.0 + p * ax)
    poly = t * (a1 + t * (a2 + t * (a3 + t * (a4 + t * a5))))
    y = 1.0 - poly * jnp.exp(-ax * ax)
    return jnp.where(x < 0.0, -y, y)


def _gelu_exact(x):
    # Hugging Face "exact" gelu: x * 0.5 * (1 + erf(x / sqrt(2)))
    return 0.5 * x * (1.0 + _erf_f32(x * _INV_SQRT2))


def ff_kernel(x_ref, w1_ref, b1_ref, w2_ref, b2_ref, m1_ref, m2_ref, o_ref):
    x = x_ref[...].astype(jnp.float32)                         # (tm, dim)
    x = x * m1_ref[...].astype(jnp.float32)                    # ib1 gate (broadcast row)
    h = jnp.dot(x, w1_ref[...].astype(jnp.float32),
                preferred_element_type=jnp.float32)            # (tm, n_hidden)   MXU
    h = h + b1_ref[...].astype(jnp.float32)
    h = _gelu_exact(h)                                         # VPU / EUP
    h = h * m2_ref[...].astype(jnp.float32)                    # ib2 gate
    y = jnp.dot(h, w2_ref[...].astype(jnp.float32),
                preferred_element_type=jnp.float32)            # (tm, dim)        MXU
    y = y + b2_ref[...].astype(jnp.float32)
    o_ref[...] = y.astype(o_ref.dtype)


def _round_up(x, m):
    return ((x + m - 1) // m) * m


def feed_forward(x, w1, b1, w2, b2, mask1, mask2, *, tile_rows=1024):
    """x: [..., dim].  w1: (n_hidden, dim), w2: (dim, n_hidden)  (PyTorch Linear layout)."""
    orig_shape = x.shape
    dim = orig_shape[-1]
    n_hidden, dim_in = w1.shape
    assert dim_in == dim and w2.shape == (dim, n_hidden)

    x2 = x.reshape(-1, dim)
    rows = x2.shape[0]

    # (in, out) weight layout so the kernel does plain row-major dots on the MXU.
    w1t = jnp.asarray(w1).T                      # (dim, n_hidden)
    w2t = jnp.asarray(w2).T                      # (n_hidden, dim)
    b1_2d = jnp.asarray(b1).reshape(1, n_hidden)
    b2_2d = jnp.asarray(b2).reshape(1, dim)
    m1_2d = jnp.asarray(mask1).reshape(1, dim)
    m2_2d = jnp.asarray(mask2).reshape(1, n_hidden)

    itemsize = 4  # f32 compute

    def footprint(tm):
        io = 2 * 2 * tm * dim * itemsize                          # x + out, double-buffered
        weights = 2 * (2 * dim * n_hidden + 2 * dim + 2 * n_hidden) * itemsize
        interm = 2 * tm * n_hidden * itemsize                     # hidden activation
        return io + weights + interm

    # Biggest row tile that fits a budget safe on all chips (v7x has 64 MiB VMEM/TC;
    # v5e scoped default is raised explicitly via vmem_limit_bytes below).
    tm = _round_up(min(tile_rows, _round_up(rows, 8)), 8)
    budget = 48 * 1024 * 1024
    while tm > 8 and footprint(tm) > budget:
        tm = _round_up(tm // 2, 8)

    padded_rows = _round_up(rows, tm)
    if padded_rows != rows:
        x2 = jnp.pad(x2, ((0, padded_rows - rows), (0, 0)))       # tail handling (no assert)

    grid = (padded_rows // tm,)
    vmem_limit = int(min(64 * 1024 * 1024, footprint(tm) + (16 << 20)))

    out = pl.pallas_call(
        ff_kernel,
        out_shape=jax.ShapeDtypeStruct((padded_rows, dim), x.dtype),
        grid_spec=pltpu.PrefetchScalarGridSpec(
            num_scalar_prefetch=0,
            grid=grid,
            in_specs=[
                pl.BlockSpec((tm, dim), lambda i: (i, 0)),          # x row tile
                pl.BlockSpec((dim, n_hidden), lambda i: (0, 0)),    # W1^T (resident)
                pl.BlockSpec((1, n_hidden), lambda i: (0, 0)),      # b1
                pl.BlockSpec((n_hidden, dim), lambda i: (0, 0)),    # W2^T (resident)
                pl.BlockSpec((1, dim), lambda i: (0, 0)),           # b2
                pl.BlockSpec((1, dim), lambda i: (0, 0)),           # ib1 gate
                pl.BlockSpec((1, n_hidden), lambda i: (0, 0)),      # ib2 gate
            ],
            out_specs=pl.BlockSpec((tm, dim), lambda i: (i, 0)),
        ),
        compiler_params=pltpu.CompilerParams(
            dimension_semantics=("parallel",),
            vmem_limit_bytes=vmem_limit,
        ),
    )(x2, w1t, b1_2d, w2t, b2_2d, m1_2d, m2_2d)

    if padded_rows != rows:
        out = out[:rows]
    return out.reshape(orig_shape)


if __name__ == "__main__":
    key = jax.random.PRNGKey(0)
    batch, seq, dim, n_hidden = 2, 8, 32, 128    # config.dim=32, config.n_hidden=128

    ks = jax.random.split(key, 7)
    x = jax.random.normal(ks[0], (batch, seq, dim), dtype=jnp.float32)

    # nn.Linear-style uniform(-1/sqrt(fan_in), 1/sqrt(fan_in)) init, PyTorch layout.
    lim1 = 1.0 / math.sqrt(dim)
    w1 = jax.random.uniform(ks[1], (n_hidden, dim), jnp.float32, -lim1, lim1)
    b1 = jax.random.uniform(ks[2], (n_hidden,), jnp.float32, -lim1, lim1)
    lim2 = 1.0 / math.sqrt(n_hidden)
    w2 = jax.random.uniform(ks[3], (dim, n_hidden), jnp.float32, -lim2, lim2)
    b2 = jax.random.uniform(ks[4], (dim,), jnp.float32, -lim2, lim2)
    # SlimLayer gates (ones at init; non-trivial values here to exercise the path).
    m1 = jax.random.uniform(ks[5], (dim,), jnp.float32, 0.5, 1.5)
    m2 = jax.random.uniform(ks[6], (n_hidden,), jnp.float32, 0.5, 1.5)

    out = feed_forward(x, w1, b1, w2, b2, m1, m2)
    jax.block_until_ready(out)

    # Plain-JAX reference of the PyTorch forward (HIGHEST precision matmuls, exact gelu).
    h = jnp.einsum("bsd,hd->bsh", x * m1, w1,
                   precision=jax.lax.Precision.HIGHEST) + b1
    h = jax.nn.gelu(h, approximate=False)
    h = h * m2
    ref = jnp.einsum("bsh,dh->bsd", h, w2,
                     precision=jax.lax.Precision.HIGHEST) + b2

    assert out.shape == x.shape
    max_err = float(jnp.max(jnp.abs(out - ref)))
    assert max_err < 5e-3, f"mismatch vs reference: max abs err {max_err}"
    print("KERNEL_OK")
</pallas_src>

<mosaic_0001>
module attributes {stable_mosaic.version = 11 : i64} {
  func.func @ff_kernel(%arg0: i32, %arg1: memref<16x32xf32, #tpu.memory_space<vmem>>, %arg2: memref<32x128xf32, #tpu.memory_space<vmem>>, %arg3: memref<1x128xf32, #tpu.memory_space<vmem>>, %arg4: memref<128x32xf32, #tpu.memory_space<vmem>>, %arg5: memref<1x32xf32, #tpu.memory_space<vmem>>, %arg6: memref<1x32xf32, #tpu.memory_space<vmem>>, %arg7: memref<1x128xf32, #tpu.memory_space<vmem>>, %arg8: memref<16x32xf32, #tpu.memory_space<vmem>>) attributes {dimension_semantics = [#tpu.dimension_semantics<parallel>], iteration_bounds = array<i64: 1>, scalar_prefetch = 0 : i64, scratch_operands = 0 : i64, tpu.core_type = #tpu.core_type<tc>, window_params = [{transform_indices = @transform_0, window_bounds = array<i64: 16, 32>}, {pipeline_mode = #tpu.pipeline_mode<synchronous>, transform_indices = @transform_1, window_bounds = array<i64: 32, 128>}, {pipeline_mode = #tpu.pipeline_mode<synchronous>, transform_indices = @transform_2, window_bounds = array<i64: 1, 128>}, {pipeline_mode = #tpu.pipeline_mode<synchronous>, transform_indices = @transform_3, window_bounds = array<i64: 128, 32>}, {pipeline_mode = #tpu.pipeline_mode<synchronous>, transform_indices = @transform_4, window_bounds = array<i64: 1, 32>}, {pipeline_mode = #tpu.pipeline_mode<synchronous>, transform_indices = @transform_5, window_bounds = array<i64: 1, 32>}, {pipeline_mode = #tpu.pipeline_mode<synchronous>, transform_indices = @transform_6, window_bounds = array<i64: 1, 128>}, {transform_indices = @transform_7, window_bounds = array<i64: 16, 32>}]} {
    %c0 = arith.constant 0 : index
    %c0_0 = arith.constant 0 : index
    %0 = vector.load %arg1[%c0, %c0_0] : memref<16x32xf32, #tpu.memory_space<vmem>>, vector<16x32xf32>
    %c0_1 = arith.constant 0 : index
    %c0_2 = arith.constant 0 : index
    %1 = vector.load %arg6[%c0_1, %c0_2] : memref<1x32xf32, #tpu.memory_space<vmem>>, vector<1x32xf32>
    %2 = vector.broadcast %1 : vector<1x32xf32> to vector<16x32xf32>
    %3 = arith.mulf %0, %2 : vector<16x32xf32>
    %c0_3 = arith.constant 0 : index
    %c0_4 = arith.constant 0 : index
    %4 = vector.load %arg2[%c0_3, %c0_4] : memref<32x128xf32, #tpu.memory_space<vmem>>, vector<32x128xf32>
    %cst = arith.constant dense<0.000000e+00> : vector<16x128xf32>
    %5 = tpu.matmul %3, %4, %cst {dimension_numbers = #tpu.dot_dimension_numbers<[1], [0], [0], [1], [0, 0, 1, 1], [], []>} : vector<16x32xf32>, vector<32x128xf32>, vector<16x128xf32> -> vector<16x128xf32>
    %c0_5 = arith.constant 0 : index
    %c0_6 = arith.constant 0 : index
    %6 = vector.load %arg3[%c0_5, %c0_6] : memref<1x128xf32, #tpu.memory_space<vmem>>, vector<1x128xf32>
    %7 = vector.broadcast %6 : vector<1x128xf32> to vector<16x128xf32>
    %8 = arith.addf %5, %7 : vector<16x128xf32>
    %cst_7 = arith.constant 5.000000e-01 : f32
    %9 = vector.broadcast %cst_7 : f32 to vector<16x128xf32>
    %10 = arith.mulf %9, %8 : vector<16x128xf32>
    %cst_8 = arith.constant 0.707106769 : f32
    %11 = vector.broadcast %cst_8 : f32 to vector<16x128xf32>
    %12 = arith.mulf %8, %11 : vector<16x128xf32>
    %13 = math.absf %12 : vector<16x128xf32>
    %cst_9 = arith.constant 0.327591091 : f32
    %14 = vector.broadcast %cst_9 : f32 to vector<16x128xf32>
    %15 = arith.mulf %14, %13 : vector<16x128xf32>
    %cst_10 = arith.constant 1.000000e+00 : f32
    %16 = vector.broadcast %cst_10 : f32 to vector<16x128xf32>
    %17 = arith.addf %16, %15 : vector<16x128xf32>
    %cst_11 = arith.constant 1.000000e+00 : f32
    %18 = vector.broadcast %cst_11 : f32 to vector<16x128xf32>
    %19 = arith.divf %18, %17 : vector<16x128xf32>
    %cst_12 = arith.constant 1.06140542 : f32
    %20 = vector.broadcast %cst_12 : f32 to vector<16x128xf32>
    %21 = arith.mulf %19, %20 : vector<16x128xf32>
    %cst_13 = arith.constant -1.45315206 : f32
    %22 = vector.broadcast %cst_13 : f32 to vector<16x128xf32>
    %23 = arith.addf %22, %21 : vector<16x128xf32>
    %24 = arith.mulf %19, %23 : vector<16x128xf32>
    %cst_14 = arith.constant 1.42141378 : f32
    %25 = vector.broadcast %cst_14 : f32 to vector<16x128xf32>
    %26 = arith.addf %25, %24 : vector<16x128xf32>
    %27 = arith.mulf %19, %26 : vector<16x128xf32>
    %cst_15 = arith.constant -0.284496725 : f32
    %28 = vector.broadcast %cst_15 : f32 to vector<16x128xf32>
    %29 = arith.addf %28, %27 : vector<16x128xf32>
    %30 = arith.mulf %19, %29 : vector<16x128xf32>
    %cst_16 = arith.constant 0.254829586 : f32
    %31 = vector.broadcast %cst_16 : f32 to vector<16x128xf32>
    %32 = arith.addf %31, %30 : vector<16x128xf32>
    %33 = arith.mulf %19, %32 : vector<16x128xf32>
    %cst_17 = arith.constant 0.000000e+00 : f32
    %34 = vector.broadcast %cst_17 : f32 to vector<16x128xf32>
    %35 = arith.subf %34, %13 : vector<16x128xf32>
    %36 = arith.mulf %35, %13 : vector<16x128xf32>
    %37 = math.exp %36 : vector<16x128xf32>
    %38 = arith.mulf %33, %37 : vector<16x128xf32>
    %cst_18 = arith.constant 1.000000e+00 : f32
    %39 = vector.broadcast %cst_18 : f32 to vector<16x128xf32>
    %40 = arith.subf %39, %38 : vector<16x128xf32>
    %cst_19 = arith.constant 0.000000e+00 : f32
    %41 = vector.broadcast %cst_19 : f32 to vector<16x128xf32>
    %42 = arith.cmpf olt, %12, %41 : vector<16x128xf32>
    %cst_20 = arith.constant 0.000000e+00 : f32
    %43 = vector.broadcast %cst_20 : f32 to vector<16x128xf32>
    %44 = arith.subf %43, %40 : vector<16x128xf32>
    %45 = arith.select %42, %44, %40 : vector<16x128xi1>, vector<16x128xf32>
    %cst_21 = arith.constant 1.000000e+00 : f32
    %46 = vector.broadcast %cst_21 : f32 to vector<16x128xf32>
    %47 = arith.addf %46, %45 : vector<16x128xf32>
    %48 = arith.mulf %10, %47 : vector<16x128xf32>
    %c0_22 = arith.constant 0 : index
    %c0_23 = arith.constant 0 : index
    %49 = vector.load %arg7[%c0_22, %c0_23] : memref<1x128xf32, #tpu.memory_space<vmem>>, vector<1x128xf32>
    %50 = vector.broadcast %49 : vector<1x128xf32> to vector<16x128xf32>
    %51 = arith.mulf %48, %50 : vector<16x128xf32>
    %c0_24 = arith.constant 0 : index
    %c0_25 = arith.constant 0 : index
    %52 = vector.load %arg4[%c0_24, %c0_25] : memref<128x32xf32, #tpu.memory_space<vmem>>, vector<128x32xf32>
    %cst_26 = arith.constant dense<0.000000e+00> : vector<16x32xf32>
    %53 = tpu.matmul %51, %52, %cst_26 {dimension_numbers = #tpu.dot_dimension_numbers<[1], [0], [0], [1], [0, 0, 1, 1], [], []>} : vector<16x128xf32>, vector<128x32xf32>, vector<16x32xf32> -> vector<16x32xf32>
    %c0_27 = arith.constant 0 : index
    %c0_28 = arith.constant 0 : index
    %54 = vector.load %arg5[%c0_27, %c0_28] : memref<1x32xf32, #tpu.memory_space<vmem>>, vector<1x32xf32>
    %55 = vector.broadcast %54 : vector<1x32xf32> to vector<16x32xf32>
    %56 = arith.addf %53, %55 : vector<16x32xf32>
    %c0_29 = arith.constant 0 : index
    %c0_30 = arith.constant 0 : index
    %57 = vector.load %arg8[%c0_29, %c0_30] : memref<16x32xf32, #tpu.memory_space<vmem>>, vector<16x32xf32>
    tpu.vector_store %arg8[%c0_29, %c0_30], %56 {strides = array<i32>} : memref<16x32xf32, #tpu.memory_space<vmem>>, vector<16x32xf32>,
    return
  }
  func.func @transform_0(%arg0: i32) -> (i32, i32) {
    %c0_i32 = arith.constant 0 : i32
    %c0_i32_0 = arith.constant 0 : i32
    return %arg0, %c0_i32 : i32, i32
  }
  func.func @transform_1(%arg0: i32) -> (i32, i32) {
    %c0_i32 = arith.constant 0 : i32
    %c0_i32_0 = arith.constant 0 : i32
    %c0_i32_1 = arith.constant 0 : i32
    return %c0_i32, %c0_i32_0 : i32, i32
  }
  func.func @transform_2(%arg0: i32) -> (i32, i32) {
    %c0_i32 = arith.constant 0 : i32
    %c0_i32_0 = arith.constant 0 : i32
    %c0_i32_1 = arith.constant 0 : i32
    return %c0_i32, %c0_i32_0 : i32, i32
  }
  func.func @transform_3(%arg0: i32) -> (i32, i32) {
    %c0_i32 = arith.constant 0 : i32
    %c0_i32_0 = arith.constant 0 : i32
    %c0_i32_1 = arith.constant 0 : i32
    return %c0_i32, %c0_i32_0 : i32, i32
  }
  func.func @transform_4(%arg0: i32) -> (i32, i32) {
    %c0_i32 = arith.constant 0 : i32
    %c0_i32_0 = arith.constant 0 : i32
    %c0_i32_1 = arith.constant 0 : i32
    return %c0_i32, %c0_i32_0 : i32, i32
  }
  func.func @transform_5(%arg0: i32) -> (i32, i32) {
    %c0_i32 = arith.constant 0 : i32
    %c0_i32_0 = arith.constant 0 : i32
    %c0_i32_1 = arith.constant 0 : i32
    return %c0_i32, %c0_i32_0 : i32, i32
  }
  func.func @transform_6(%arg0: i32) -> (i32, i32) {
    %c0_i32 = arith.constant 0 : i32
    %c0_i32_0 = arith.constant 0 : i32
    %c0_i32_1 = arith.constant 0 : i32
    return %c0_i32, %c0_i32_0 : i32, i32
  }
  func.func @transform_7(%arg0: i32) -> (i32, i32) {
    %c0_i32 = arith.constant 0 : i32
    %c0_i32_0 = arith.constant 0 : i32
    return %arg0, %c0_i32 : i32, i32
  }
}

</mosaic_0001>

<llo_original>
// kernel: tpu_custom_call.1
$region0: #{tpu_custom_call.1}
  #allocation0 [shape = 'u32[]', space=smem, size = 0x4, offset = 0x4, fixed_abs, tag = 'smem constant byte address 0x4 - core index']
  #allocation1 [shape = 'u32[144,128]{1,0:T(1,128)}', space=vmem, size = 0x12000, scoped, tag = 'internal scratch']
  %s0 = inlined_call_operand.vmem [shape: f32[16,32], index: 0, kind: input, shape index: {}]
  %s1 = inlined_call_operand.vmem [shape: f32[32,128], index: 1, kind: input, shape index: {}]
  %s2 = inlined_call_operand.vmem [shape: f32[1,128], index: 2, kind: input, shape index: {}]
  %s3 = inlined_call_operand.vmem [shape: f32[128,32], index: 3, kind: input, shape index: {}]
  %s4 = inlined_call_operand.vmem [shape: f32[1,32], index: 4, kind: input, shape index: {}]
  %s5 = inlined_call_operand.vmem [shape: f32[1,32], index: 5, kind: input, shape index: {}]
  %s6 = inlined_call_operand.vmem [shape: f32[1,128], index: 6, kind: input, shape index: {}]
  %s7 = inlined_call_operand.hbm [shape: f32[16,32], index: 7, kind: output, shape index: {}]
  %s8 = sld [smem:[#allocation0]]
  $region38: #{tpu_custom_call.1} parent=0
    _
  %s10 = ssub.s32 1, %s8
  %s11 = scalar_select 0, %s10, %s8
  $region1: #{tpu_custom_call.1} parent=0
    #allocation2 [shape = 'u8[8192]{0}', space=vmem, size = 0x2000, scoped, tag = 'output window, operand 0, single buffered']
    #allocation3 [shape = 's32[1]{0}', space=sflag, size = 0x4, scoped, tag = 'scoped memory for tpu_custom_call.1']
    %12 = vsyncpa [#allocation3], 0
    // Predicated region
    $region2: #{tpu_custom_call.1} parent=1 // pred_check
      _
    $region3: #{tpu_custom_call.1} parent=1 // pred_check_branch
      %14 = sbr.rel (0) target = $region5
    $region4: #{tpu_custom_call.1} parent=1 // pred_region
      _
    $region5: #{tpu_custom_call.1} parent=1 // pred_fallthru
      _
    // Predicated region
    $region6: #{tpu_custom_call.1} parent=1 // pred_check
      _
    $region7: #{tpu_custom_call.1} parent=1 // pred_check_branch
      %16 = sbr.rel (0) target = $region9
    $region8: #{tpu_custom_call.1} parent=1 // pred_region
      _
    $region9: #{tpu_custom_call.1} parent=1 // pred_fallthru
      _
    // Predicated region
    $region10: #{tpu_custom_call.1} parent=1 // pred_check
      _
    $region11: #{tpu_custom_call.1} parent=1 // pred_check_branch
      %18 = sbr.rel (0) target = $region13
    $region12: #{tpu_custom_call.1} parent=1 // pred_region
      _
    $region13: #{tpu_custom_call.1} parent=1 // pred_fallthru
      _
    // Predicated region
    $region14: #{tpu_custom_call.1} parent=1 // pred_check
      _
    $region15: #{tpu_custom_call.1} parent=1 // pred_check_branch
      %20 = sbr.rel (0) target = $region17
    $region16: #{tpu_custom_call.1} parent=1 // pred_region
      _
    $region17: #{tpu_custom_call.1} parent=1 // pred_fallthru
      _
    // Predicated region
    $region18: #{tpu_custom_call.1} parent=1 // pred_check
      _
    $region19: #{tpu_custom_call.1} parent=1 // pred_check_branch
      %22 = sbr.rel (0) target = $region21
    $region20: #{tpu_custom_call.1} parent=1 // pred_region
      _
    $region21: #{tpu_custom_call.1} parent=1 // pred_fallthru
      _
    // Predicated region
    $region22: #{tpu_custom_call.1} parent=1 // pred_check
      _
    $region23: #{tpu_custom_call.1} parent=1 // pred_check_branch
      %24 = sbr.rel (0) target = $region25
    $region24: #{tpu_custom_call.1} parent=1 // pred_region
      _
    $region25: #{tpu_custom_call.1} parent=1 // pred_fallthru
      _
    // Predicated region
    $region26: #{tpu_custom_call.1} parent=1 // pred_check
      _
    $region27: #{tpu_custom_call.1} parent=1 // pred_check_branch
      %26 = sbr.rel (0) target = $region29
    $region28: #{tpu_custom_call.1} parent=1 // pred_region
      _
    $region29: #{tpu_custom_call.1} parent=1 // pred_fallthru
      _
    %v27 = vld [vmem:[%s0] sm:$0xff]
    %v28 = vld [vmem:[%s0 + $0x8] sm:$0xff]
    %v29 = vld [vmem:[%s5] sm:$0x1]
    %v31 = vlaneseq
    %v32 = vshrl.u32 %v31, 7
    %v33 = vsub.s32 0, %v32
    %v34 = vrot.slane %v29, %v33
    %v36 = vmul.f32 %v27, %v34
    %v37 = vmul.f32 %v28, %v34
    %v38 = vld [vmem:[%s1] sm:$0xff]
    %v39 = vld [vmem:[%s1 + $0x8] sm:$0xff]
    %v40 = vld [vmem:[%s1 + $0x10] sm:$0xff]
    %v41 = vld [vmem:[%s1 + $0x18] sm:$0xff]
    %v42 = vld [vmem:[%s2] sm:$0x1]
    %v44 = vlaneseq
    %v45 = vshrl.u32 %v44, 7
    %v46 = vsub.s32 0, %v45
    %v47 = vrot.slane %v42, %v46
    %vm49 = vcmask 261120
    %v51 = vsel %vm49, %v36, 0
    %v54 = vsel %vm49, %v37, 0
    %56 = vmatprep.subr.mxu0 0.0
    %57 = vmatpush1.msra.mxu0 %v38
    %58 = vmatprep.subr.mxu0 0.0
    %59 = vmatpush1.msra.mxu0 %v39
    %60 = vmatprep.subr.mxu0 0.0
    %61 = vmatpush1.msra.mxu0 %v40
    %62 = vmatprep.subr.mxu0 0.0
    %63 = vmatpush1.msra.mxu0 %v41
    %64 = vmatprep.subr.mxu0 0.0
    %65 = vmatpush1.msra.mxu0 0.0
    %66 = vmatprep.subr.mxu0 0.0
    %67 = vmatpush1.msra.mxu0 0.0
    %68 = vmatprep.subr.mxu0 0.0
    %69 = vmatpush1.msra.mxu0 0.0
    %70 = vmatprep.subr.mxu0 0.0
    %71 = vmatpush1.msra.mxu0 0.0
    %72 = vmatprep.subr.mxu0 0.0
    %73 = vmatpush1.msra.mxu0 0.0
    %74 = vmatprep.subr.mxu0 0.0
    %75 = vmatpush1.msra.mxu0 0.0
    %76 = vmatprep.subr.mxu0 0.0
    %77 = vmatpush1.msra.mxu0 0.0
    %78 = vmatprep.subr.mxu0 0.0
    %79 = vmatpush1.msra.mxu0 0.0
    %80 = vmatprep.subr.mxu0 0.0
    %81 = vmatpush1.msra.mxu0 0.0
    %82 = vmatprep.subr.mxu0 0.0
    %83 = vmatpush1.msra.mxu0 0.0
    %84 = vmatprep.subr.mxu0 0.0
    %85 = vmatpush1.msra.mxu0 0.0
    %86 = vmatprep.subr.mxu0 0.0
    %87 = vmatpush1.msra.mxu0 0.0
    %88 = vmatprep.subr.mxu0 0.0
    %89 = vmatpush1.msra.mxu0 0.0
    %90 = vmatprep.subr.mxu0 0.0
    %91 = vmatpush1.msra.mxu0 0.0
    %92 = vmatprep.subr.mxu0 0.0
    %93 = vmatpush1.msra.mxu0 0.0
    %94 = vmatprep.subr.mxu0 0.0
    %95 = vmatpush1.msra.mxu0 0.0
    %96 = vmatprep.subr.mxu0 0.0
    %97 = vmatpush1.msra.mxu0 0.0
    %98 = vmatprep.subr.mxu0 0.0
    %99 = vmatpush1.msra.mxu0 0.0
    %100 = vmatprep.subr.mxu0 0.0
    %101 = vmatpush1.msra.mxu0 0.0
    %102 = vmatprep.subr.mxu0 0.0
    %103 = vmatpush1.msra.mxu0 0.0
    %104 = vmatprep.subr.mxu0 0.0
    %105 = vmatpush1.msra.mxu0 0.0
    %106 = vmatprep.subr.mxu0 0.0
    %107 = vmatpush1.msra.mxu0 0.0
    %108 = vmatprep.subr.mxu0 0.0
    %109 = vmatpush1.msra.mxu0 0.0
    %110 = vmatprep.subr.mxu0 0.0
    %111 = vmatpush1.msra.mxu0 0.0
    %112 = vmatprep.subr.mxu0 0.0
    %113 = vmatpush1.msra.mxu0 0.0
    %114 = vmatprep.subr.mxu0 0.0
    %115 = vmatpush1.msra.mxu0 0.0
    %116 = vmatprep.subr.mxu0 0.0
    %117 = vmatpush1.msra.mxu0 0.0
    %118 = vmatprep.subr.mxu0 0.0
    %119 = vmatpush1.msra.mxu0 0.0
    %120 = vmatprep.mubr.f32.mxu0 0.0
    %121 = vmatmul.mubr.f32.gmra.mrb[0].mxu0 %v51
    %v122 = vpop.f32.mrb[0].mxu0
    %v123 = vadd.f32 %v47, %v122
    %v124 = vpop.f32.mrb[0].mxu0
    %125 = vmatprep.mubr.f32.mxu0 0.0
    %126 = vmatmul.mubr.f32.gmra.mrb[0].mxu0 %v54
    %v127 = vpop.f32.mrb[0].mxu0
    %v128 = vadd.f32 %v47, %v127
    %v129 = vpop.f32.mrb[0].mxu0
    %130 = vdwg.mxu0
    %v131 = vmul.f32 %v123, 0.5
    %v132 = vmul.f32 %v128, 0.5
    %v133 = vmul.f32 %v123, 0.70710677
    %v134 = vmul.f32 %v128, 0.70710677
    %v135 = vand.u32 2147483647, %v133
    %v136 = vand.u32 2147483647, %v134
    %v137 = vmul.f32 %v135, 0.3275911
    %v138 = vmul.f32 %v136, 0.3275911
    %v139 = vadd.f32 %v137, 1.0
    %v140 = vadd.f32 %v138, 1.0
    %v141 = vrcp.pop %v139
    %v142 = vmul.f32 1.0, %v141
    %v143 = vrcp.pop %v140
    %v144 = vmul.f32 1.0, %v143
    %v145 = vmul.f32 %v142, 1.0614054
    %v146 = vmul.f32 %v144, 1.0614054
    %v147 = vadd.f32 %v145, -1.4531521
    %v148 = vadd.f32 %v146, -1.4531521
    %v149 = vmul.f32 %v142, %v147
    %v150 = vmul.f32 %v144, %v148
    %v151 = vadd.f32 %v149, 1.4214138
    %v152 = vadd.f32 %v150, 1.4214138
    %v153 = vmul.f32 %v142, %v151
    %v154 = vmul.f32 %v144, %v152
    %v155 = vadd.f32 %v153, -0.28449672
    %v156 = vadd.f32 %v154, -0.28449672
    %v157 = vmul.f32 %v142, %v155
    %v158 = vmul.f32 %v144, %v156
    %v159 = vadd.f32 %v157, 0.2548296
    %v160 = vadd.f32 %v158, 0.2548296
    %v161 = vmul.f32 %v142, %v159
    %v162 = vmul.f32 %v144, %v160
    %v163 = vsub.f32 0.0, %v135
    %v164 = vsub.f32 0.0, %v136
    %v165 = vmul.f32 %v163, %v135
    %v166 = vmul.f32 %v164, %v136
    %v167 = vmul.f32 %v165, 1.442695
    %v168 = vpow.pop %v167
    %v169 = vmul.f32 %v166, 1.442695
    %v170 = vpow.pop %v169
    %v171 = vmul.f32 %v161, %v168
    %v172 = vmul.f32 %v162, %v170
    %v173 = vsub.f32 1.0, %v171
    %v174 = vsub.f32 1.0, %v172
    %vm175 = vcmp.lt.f32.partialorder %v133, 0.0
    %vm176 = vcmp.lt.f32.partialorder %v134, 0.0
    %v177 = vsub.f32 0.0, %v173
    %v178 = vsub.f32 0.0, %v174
    %v179 = vsel %vm175, %v177, %v173
    %v180 = vsel %vm176, %v178, %v174
    %v181 = vadd.f32 %v179, 1.0
    %v182 = vadd.f32 %v180, 1.0
    %v183 = vmul.f32 %v131, %v181
    %v184 = vmul.f32 %v132, %v182
    %v185 = vld [vmem:[%s6] sm:$0x1]
    %v187 = vlaneseq
    %v188 = vshrl.u32 %v187, 7
    %v189 = vsub.s32 0, %v188
    %v190 = vrot.slane %v185, %v189
    %v192 = vmul.f32 %v183, %v190
    %v193 = vmul.f32 %v184, %v190
    %v194 = vld [vmem:[%s3] sm:$0xff]
    %v195 = vld [vmem:[%s3 + $0x8] sm:$0xff]
    %v196 = vld [vmem:[%s3 + $0x10] sm:$0xff]
    %v197 = vld [vmem:[%s3 + $0x18] sm:$0xff]
    %v198 = vld [vmem:[%s3 + $0x20] sm:$0xff]
    %v199 = vld [vmem:[%s3 + $0x28] sm:$0xff]
    %v200 = vld [vmem:[%s3 + $0x30] sm:$0xff]
    %v201 = vld [vmem:[%s3 + $0x38] sm:$0xff]
    %v202 = vld [vmem:[%s3 + $0x40] sm:$0xff]
    %v203 = vld [vmem:[%s3 + $0x48] sm:$0xff]
    %v204 = vld [vmem:[%s3 + $0x50] sm:$0xff]
    %v205 = vld [vmem:[%s3 + $0x58] sm:$0xff]
    %v206 = vld [vmem:[%s3 + $0x60] sm:$0xff]
    %v207 = vld [vmem:[%s3 + $0x68] sm:$0xff]
    %v208 = vld [vmem:[%s3 + $0x70] sm:$0xff]
    %v209 = vld [vmem:[%s3 + $0x78] sm:$0xff]
    %v210 = vld [vmem:[%s4] sm:$0x1]
    %v212 = vlaneseq
    %v213 = vshrl.u32 %v212, 7
    %v214 = vsub.s32 0, %v213
    %v215 = vrot.slane %v210, %v214
    %217 = vmatprep.subr.mxu0 0.0
    %218 = vmatpush1.msra.mxu0 %v194
    %219 = vmatprep.subr.mxu0 0.0
    %220 = vmatpush1.msra.mxu0 %v195
    %221 = vmatprep.subr.mxu0 0.0
    %222 = vmatpush1.msra.mxu0 %v196
    %223 = vmatprep.subr.mxu0 0.0
    %224 = vmatpush1.msra.mxu0 %v197
    %225 = vmatprep.subr.mxu0 0.0
    %226 = vmatpush1.msra.mxu0 %v198
    %227 = vmatprep.subr.mxu0 0.0
    %228 = vmatpush1.msra.mxu0 %v199
    %229 = vmatprep.subr.mxu0 0.0
    %230 = vmatpush1.msra.mxu0 %v200
    %231 = vmatprep.subr.mxu0 0.0
    %232 = vmatpush1.msra.mxu0 %v201
    %233 = vmatprep.subr.mxu0 0.0
    %234 = vmatpush1.msra.mxu0 %v202
    %235 = vmatprep.subr.mxu0 0.0
    %236 = vmatpush1.msra.mxu0 %v203
    %237 = vmatprep.subr.mxu0 0.0
    %238 = vmatpush1.msra.mxu0 %v204
    %239 = vmatprep.subr.mxu0 0.0
    %240 = vmatpush1.msra.mxu0 %v205
    %241 = vmatprep.subr.mxu0 0.0
    %242 = vmatpush1.msra.mxu0 %v206
    %243 = vmatprep.subr.mxu0 0.0
    %244 = vmatpush1.msra.mxu0 %v207
    %245 = vmatprep.subr.mxu0 0.0
    %246 = vmatpush1.msra.mxu0 %v208
    %247 = vmatprep.subr.mxu0 0.0
    %248 = vmatpush1.msra.mxu0 %v209
    %249 = vmatprep.subr.mxu0 0.0
    %250 = vmatpush1.msra.mxu0 0.0
    %251 = vmatprep.subr.mxu0 0.0
    %252 = vmatpush1.msra.mxu0 0.0
    %253 = vmatprep.subr.mxu0 0.0
    %254 = vmatpush1.msra.mxu0 0.0
    %255 = vmatprep.subr.mxu0 0.0
    %256 = vmatpush1.msra.mxu0 0.0
    %257 = vmatprep.subr.mxu0 0.0
    %258 = vmatpush1.msra.mxu0 0.0
    %259 = vmatprep.subr.mxu0 0.0
    %260 = vmatpush1.msra.mxu0 0.0
    %261 = vmatprep.subr.mxu0 0.0
    %262 = vmatpush1.msra.mxu0 0.0
    %263 = vmatprep.subr.mxu0 0.0
    %264 = vmatpush1.msra.mxu0 0.0
    %265 = vmatprep.subr.mxu0 0.0
    %266 = vmatpush1.msra.mxu0 0.0
    %267 = vmatprep.subr.mxu0 0.0
    %268 = vmatpush1.msra.mxu0 0.0
    %269 = vmatprep.subr.mxu0 0.0
    %270 = vmatpush1.msra.mxu0 0.0
    %271 = vmatprep.subr.mxu0 0.0
    %272 = vmatpush1.msra.mxu0 0.0
    %273 = vmatprep.subr.mxu0 0.0
    %274 = vmatpush1.msra.mxu0 0.0
    %275 = vmatprep.subr.mxu0 0.0
    %276 = vmatpush1.msra.mxu0 0.0
    %277 = vmatprep.subr.mxu0 0.0
    %278 = vmatpush1.msra.mxu0 0.0
    %279 = vmatprep.subr.mxu0 0.0
    %280 = vmatpush1.msra.mxu0 0.0
    %281 = vmatprep.mubr.f32.mxu0 0.0
    %282 = vmatmul.mubr.f32.gmra.mrb[0].mxu0 %v192
    %v283 = vpop.f32.mrb[0].mxu0
    %v284 = vadd.f32 %v215, %v283
    %v285 = vpop.f32.mrb[0].mxu0
    %286 = vmatprep.mubr.f32.mxu0 0.0
    %287 = vmatmul.mubr.f32.gmra.mrb[0].mxu0 %v193
    %v288 = vpop.f32.mrb[0].mxu0
    %v289 = vadd.f32 %v215, %v288
    %v290 = vpop.f32.mrb[0].mxu0
    %291 = vdwg.mxu0
    %292 = vst.msk [vmem:[#allocation2] sm:$0xff] %vm49, %v284
    %293 = vst.msk [vmem:[#allocation2 + $0x8] sm:$0xff] %vm49, %v289
    // Predicated region
    $region30: #{tpu_custom_call.1} parent=1 // pred_check
      _
    $region31: #{tpu_custom_call.1} parent=1 // pred_check_branch
      %295 = sbr.rel (0) target = $region33
    $region32: #{tpu_custom_call.1} parent=1 // pred_region
      %s297 = ssub.s32 256, 256
      %298 = vsyncadd [#allocation3], %s297
      %s299 = sshll.u32 [#allocation2], 4
      %s300 = int_to_ptr.vmem [resolvable:$true] %s299
      %305 = dma.vmem_to_hbm [thread:$0]  %s300, 256, %s7, [#allocation3], 128, 128, 8
    $region33: #{tpu_custom_call.1} parent=1 // pred_fallthru
      _
    // Predicated region
    $region34: #{tpu_custom_call.1} parent=1 // pred_check
      _
    $region35: #{tpu_custom_call.1} parent=1 // pred_check_branch
      %307 = sbr.rel (0) target = $region37
    $region36: #{tpu_custom_call.1} parent=1 // pred_region
      %308 = dma.done [#allocation3], 256
    $region37: #{tpu_custom_call.1} parent=1 // pred_fallthru
      _
    %309 = vsyncpa [#allocation3], 1

</llo_original>
